<compile_context>
chip_gen: v7x
topology: tpu7x:2x2x1
jax: 0.10.0
libtpu: 0.0.40
codegen_flags: <defaults>
</compile_context>

<pallas_src>
import functools

import jax
import jax.numpy as jnp
from jax.experimental import pallas as pl
from jax.experimental.pallas import tpu as pltpu

NEG_INF = -1e30
NEG_SLOPE = 0.2  # PyG GATv2Conv default negative_slope


def _round_up(v, m):
    return (v + m - 1) // m * m


def _default_mxu_tile():
    # v6e/v7x MXUs are 2x256x256 -> 256 tiles; 128 everywhere else (v5e 4x128x128).
    try:
        kind = jax.devices()[0].device_kind.lower()
        if "v6" in kind or "v7" in kind:
            return 256
    except Exception:
        pass
    return 128


def _pick_tile(dim, preferred):
    for t in (preferred, 256, 128):
        if dim % t == 0:
            return t
    return dim  # small dim: use the full extent


# ---------------------------------------------------------------------------
# Tiled projection matmul (bf16 in, f32 accumulate, writeback on last k-step)
# ---------------------------------------------------------------------------
def _matmul_kernel(a_ref, b_ref, o_ref, acc_ref):
    @pl.when(pl.program_id(2) == 0)
    def _():
        acc_ref[...] = jnp.zeros(acc_ref.shape, acc_ref.dtype)

    acc_ref[...] += jnp.dot(a_ref[...], b_ref[...],
                            preferred_element_type=jnp.float32)

    @pl.when(pl.program_id(2) == pl.num_programs(2) - 1)
    def _():
        o_ref[...] = acc_ref[...].astype(o_ref.dtype)


def _matmul(a, b, *, out_dtype=jnp.bfloat16):
    m, k = a.shape
    k2, n = b.shape
    assert k == k2
    t = _default_mxu_tile()
    tm, tn, tk = _pick_tile(m, t), _pick_tile(n, t), _pick_tile(k, t)
    assert m % tm == 0 and n % tn == 0 and k % tk == 0, (m, n, k, tm, tn, tk)
    return pl.pallas_call(
        _matmul_kernel,
        out_shape=jax.ShapeDtypeStruct((m, n), out_dtype),
        grid=(m // tm, n // tn, k // tk),
        in_specs=[pl.BlockSpec((tm, tk), lambda i, j, kk: (i, kk)),
                  pl.BlockSpec((tk, tn), lambda i, j, kk: (kk, j))],
        out_specs=pl.BlockSpec((tm, tn), lambda i, j, kk: (i, j)),
        scratch_shapes=[pltpu.VMEM((tm, tn), jnp.float32)],
        compiler_params=pltpu.CompilerParams(
            dimension_semantics=("parallel", "parallel", "arbitrary")),
    )(a, b)


# ---------------------------------------------------------------------------
# GATv2 attention layer: flash-style online softmax over source tiles
# ---------------------------------------------------------------------------
def _gatv2_attn_kernel(occ_ref, adj_ref, hr_ref, hl_ref, hlh_ref, att_ref,
                       bias_ref, out_ref, m_scr, l_scr, acc_scr, *,
                       heads, out_ch, apply_relu):
    i_idx = pl.program_id(0)
    j_idx = pl.program_id(1)
    num_j = pl.num_programs(1)
    ti, hcp = hr_ref.shape
    tj = hl_ref.shape[0]
    hc = heads * out_ch

    @pl.when(j_idx == 0)
    def _():
        m_scr[...] = jnp.full(m_scr.shape, NEG_INF, m_scr.dtype)
        l_scr[...] = jnp.zeros(l_scr.shape, l_scr.dtype)
        acc_scr[...] = jnp.zeros(acc_scr.shape, acc_scr.dtype)

    # Skip tiles with no edges at all (m/l/acc unchanged == exact).
    tile_nonempty = occ_ref[i_idx * num_j + j_idx] != 0

    @pl.when(tile_nonempty)
    def _():
        hr = hr_ref[...]                                # [Ti, HCp] bf16 targets
        hl = hl_ref[...]                                # [Tj, HCp] bf16 sources

        # bf16 score slab (half the spill traffic vs f32)
        s = hr[:, None, :] + hl[None, :, :]             # [Ti, Tj, HCp] bf16
        s = jnp.where(s > 0, s, NEG_SLOPE * s)          # LeakyReLU(0.2), bf16

        # per-head att-weighted channel reduction on the MXU:
        # att_ref is per-head masked [H, HCp]; contract over HCp (f32 acc).
        e_flat = jax.lax.dot_general(
            s.reshape(ti * tj, hcp), att_ref[...],
            dimension_numbers=(((1,), (1,)), ((), ())),
            preferred_element_type=jnp.float32)         # [Ti*Tj, H]
        e3 = e_flat.reshape(ti, tj, heads)              # [Ti, Tj, H]
        e = jnp.stack([e3[:, :, h] for h in range(heads)], axis=0)  # [H,Ti,Tj]

        adj = adj_ref[...].astype(jnp.float32)          # [Ti, Tj], 1 iff edge j->i
        edge = adj[None, :, :] > 0
        e = jnp.where(edge, e, NEG_INF)

        m_prev = m_scr[...]                                             # [H,Ti,1]
        m_new = jnp.maximum(m_prev, jnp.max(e, axis=-1, keepdims=True))
        corr = jnp.exp(m_prev - m_new)                                  # [H,Ti,1]
        # explicit zeroing of masked probs: no garbage even before a real max
        p = jnp.where(edge, jnp.exp(e - m_new), 0.0)                    # [H,Ti,Tj]
        l_scr[...] = corr * l_scr[...] + jnp.sum(p, axis=-1, keepdims=True)

        hlh = hlh_ref[...]                                              # [H,Tj,C] bf16
        acc_scr[...] = corr * acc_scr[...] + jnp.einsum(
            'hij,hjc->hic', p.astype(hlh.dtype), hlh,
            preferred_element_type=jnp.float32)
        m_scr[...] = m_new

    @pl.when(j_idx == num_j - 1)
    def _():
        inv_l = pl.reciprocal(l_scr[...], approx=True)                  # [H,Ti,1]
        o = acc_scr[...] * inv_l                                        # [H,Ti,C]
        parts = [o[h] for h in range(heads)]                            # each [Ti,C]
        if hcp > hc:
            parts.append(jnp.zeros((ti, hcp - hc), jnp.float32))
        out = jnp.concatenate(parts, axis=-1) + bias_ref[...]           # [Ti,HCp]
        if apply_relu:
            out = jnp.maximum(out, 0.0)
        out_ref[...] = out.astype(out_ref.dtype)


def _gatv2_attention(adj, hr_w, hl_w, hlh, att_hm, bias_p, *, heads, out_ch,
                     apply_relu, out_dtype, tile_i=128, tile_j=128):
    n_pad, hcp = hr_w.shape
    tj = min(tile_j, n_pad)
    ti = min(tile_i, n_pad)
    # v7x megacore: keep the parallel axis at >=4 tiles for small graphs.
    while (n_pad // ti) < 4 and ti > 32 and ti % 2 == 0 and n_pad % (ti // 2) == 0:
        ti //= 2
    num_i, num_j = n_pad // ti, n_pad // tj

    # per-tile occupancy table (scalar-prefetched to SMEM) for tile skipping
    occ = (adj.astype(jnp.float32)
              .reshape(num_i, ti, num_j, tj).sum(axis=(1, 3)) > 0)
    occ = occ.astype(jnp.int32).reshape(-1)

    kernel = functools.partial(_gatv2_attn_kernel, heads=heads, out_ch=out_ch,
                               apply_relu=apply_relu)
    return pl.pallas_call(
        kernel,
        out_shape=jax.ShapeDtypeStruct((n_pad, hcp), out_dtype),
        grid_spec=pltpu.PrefetchScalarGridSpec(
            num_scalar_prefetch=1,
            grid=(num_i, num_j),
            in_specs=[
                pl.BlockSpec((ti, tj), lambda i, j, o: (i, j)),               # adj
                pl.BlockSpec((ti, hcp), lambda i, j, o: (i, 0)),              # hr (targets)
                pl.BlockSpec((tj, hcp), lambda i, j, o: (j, 0)),              # hl (sources)
                pl.BlockSpec((heads, tj, out_ch), lambda i, j, o: (0, j, 0)), # hl per head
                pl.BlockSpec((heads, hcp), lambda i, j, o: (0, 0)),           # per-head att
                pl.BlockSpec((1, hcp), lambda i, j, o: (0, 0)),               # bias
            ],
            out_specs=pl.BlockSpec((ti, hcp), lambda i, j, o: (i, 0)),
            scratch_shapes=[
                pltpu.VMEM((heads, ti, 1), jnp.float32),       # running max m
                pltpu.VMEM((heads, ti, 1), jnp.float32),       # running denom l
                pltpu.VMEM((heads, ti, out_ch), jnp.float32),  # running acc
            ]),
        compiler_params=pltpu.CompilerParams(
            dimension_semantics=("parallel", "arbitrary")),
    )(occ, adj, hr_w, hl_w, hlh, att_hm, bias_p)


def gatv2_layer(x_pad, adj_pad, wl, wr, att, bias, *, heads, out_ch,
                apply_relu, out_dtype):
    """x_pad: [N_pad, F_pad] bf16; adj_pad: [N_pad, N_pad] bf16.
    Returns [N_pad, HCp] (out_dtype) with channels >= heads*out_ch zeroed."""
    n_pad, f_pad = x_pad.shape
    f = wl.shape[0]
    hc = heads * out_ch
    hcp = _round_up(hc, 128)

    # fused, lane-padded projection weight: [F_pad, 2*HCp] = [wl | 0 | wr | 0]
    w = jnp.zeros((f_pad, 2 * hcp), jnp.float32)
    w = w.at[:f, :hc].set(wl).at[:f, hcp:hcp + hc].set(wr)
    hlr = _matmul(x_pad, w.astype(jnp.bfloat16))        # [N_pad, 2*HCp] bf16

    hl_w = hlr[:, :hcp]                                 # source projections (wide)
    hr_w = hlr[:, hcp:]                                 # target projections (wide)
    # per-head layout for the aggregation einsum: [H, N_pad, C]
    hlh = hl_w[:, :hc].reshape(n_pad, heads, out_ch).transpose(1, 0, 2)

    # per-head masked attention matrix [H, HCp]: row h nonzero only on head h's channels
    att_hm = jnp.zeros((heads, hcp), jnp.float32)
    for h in range(heads):
        att_hm = att_hm.at[h, h * out_ch:(h + 1) * out_ch].set(att[h])
    att_hm = att_hm.astype(jnp.bfloat16)

    bias_p = jnp.zeros((1, hcp), jnp.float32).at[0, :hc].set(bias.reshape(-1))

    return _gatv2_attention(adj_pad, hr_w, hl_w, hlh, att_hm, bias_p,
                            heads=heads, out_ch=out_ch, apply_relu=apply_relu,
                            out_dtype=out_dtype)


def init_gat_params(key, n_feats, n_classes, dim_h, heads):
    ks = jax.random.split(key, 6)

    def glorot(k, shape):
        lim = (6.0 / (shape[0] + shape[1])) ** 0.5
        return jax.random.uniform(k, shape, jnp.float32, -lim, lim)

    return {
        "gat1": {
            "wl": glorot(ks[0], (n_feats, heads * dim_h)),
            "wr": glorot(ks[1], (n_feats, heads * dim_h)),
            "att": glorot(ks[2], (heads, dim_h)),
            "bias": jnp.zeros((1, heads * dim_h), jnp.float32),
        },
        "gat2": {
            "wl": glorot(ks[3], (heads * dim_h, n_classes)),
            "wr": glorot(ks[4], (heads * dim_h, n_classes)),
            "att": glorot(ks[5], (1, n_classes)),
            "bias": jnp.zeros((1, n_classes), jnp.float32),
        },
    }


def gat_forward(params, x, edge_index, *, dim_h, heads, n_classes):
    n, f = x.shape
    n_pad = _round_up(n, 128)
    f_pad = _round_up(f, 128)

    # dense adjacency (glue): adj[i, j] = 1 iff edge j -> i; self loops on all
    # (incl. padded) rows keep every softmax row well defined.
    src, dst = edge_index[0], edge_index[1]
    adj = jnp.zeros((n_pad, n_pad), jnp.float32).at[dst, src].set(1.0)
    adj = jnp.maximum(adj, jnp.eye(n_pad, dtype=jnp.float32)).astype(jnp.bfloat16)

    x_pad = jnp.pad(x, ((0, n_pad - n), (0, f_pad - f))).astype(jnp.bfloat16)

    p1, p2 = params["gat1"], params["gat2"]
    # layer 1 emits bf16 directly (halves writeback; re-consumed as bf16 anyway)
    h1 = gatv2_layer(x_pad, adj, p1["wl"], p1["wr"], p1["att"], p1["bias"],
                     heads=heads, out_ch=dim_h, apply_relu=True,
                     out_dtype=jnp.bfloat16)
    out = gatv2_layer(h1, adj, p2["wl"], p2["wr"], p2["att"], p2["bias"],
                      heads=1, out_ch=n_classes, apply_relu=False,
                      out_dtype=jnp.float32)
    return out[:n, :n_classes]


# ---------------------------------------------------------------------------
# Pure-JAX (f32) reference for a sanity check
# ---------------------------------------------------------------------------
def gatv2_reference(params, x, edge_index, *, dim_h, heads, n_classes):
    n = x.shape[0]
    src, dst = edge_index[0], edge_index[1]
    adj = jnp.zeros((n, n), jnp.float32).at[dst, src].set(1.0)
    adj = jnp.maximum(adj, jnp.eye(n, dtype=jnp.float32))

    def layer(xx, p, nh, c, relu):
        hl, hr = xx @ p["wl"], xx @ p["wr"]
        outs = []
        for h in range(nh):
            hl_h = hl[:, h * c:(h + 1) * c]
            hr_h = hr[:, h * c:(h + 1) * c]
            s = hr_h[:, None, :] + hl_h[None, :, :]
            s = jnp.where(s > 0, s, NEG_SLOPE * s)
            e = jnp.sum(s * p["att"][h][None, None, :], axis=-1)
            e = jnp.where(adj > 0, e, NEG_INF)
            a = jax.nn.softmax(e, axis=1)
            outs.append(a @ hl_h)
        o = jnp.concatenate(outs, -1) + p["bias"]
        return jnp.maximum(o, 0.0) if relu else o

    h = layer(x, params["gat1"], heads, dim_h, True)
    return layer(h, params["gat2"], 1, n_classes, False)


if __name__ == "__main__":
    N, N_FEATS, N_CLASSES, DIM_H, HEADS = 200, 32, 8, 16, 4

    key = jax.random.PRNGKey(0)
    k_x, k_p = jax.random.split(key)

    x = jax.random.normal(k_x, (N, N_FEATS), jnp.float32)
    # deterministic ring graph, both directions: 2*N edges
    idx = jnp.arange(N)
    src = jnp.concatenate([idx, (idx + 1) % N])
    dst = jnp.concatenate([(idx + 1) % N, idx])
    edge_index = jnp.stack([src, dst]).astype(jnp.int32)

    params = init_gat_params(k_p, N_FEATS, N_CLASSES, DIM_H, HEADS)

    out = gat_forward(params, x, edge_index,
                      dim_h=DIM_H, heads=HEADS, n_classes=N_CLASSES)
    out = jax.block_until_ready(out)

    assert out.shape == (N, N_CLASSES)
    assert bool(jnp.all(jnp.isfinite(out)))

    ref = gatv2_reference(params, x, edge_index,
                          dim_h=DIM_H, heads=HEADS, n_classes=N_CLASSES)
    err = float(jnp.max(jnp.abs(out - ref)))
    tol = 0.1 + 0.05 * float(jnp.max(jnp.abs(ref)))   # bf16 data path + approx recip
    assert err < tol, f"max abs error {err} exceeds tolerance {tol}"

    print("KERNEL_OK")
</pallas_src>

<mosaic_0001>
module attributes {stable_mosaic.version = 11 : i64} {
  func.func @_matmul_kernel(%arg0: i32, %arg1: i32, %arg2: i32, %arg3: memref<128x128xbf16, #tpu.memory_space<vmem>>, %arg4: memref<128x128xbf16, #tpu.memory_space<vmem>>, %arg5: memref<128x128xbf16, #tpu.memory_space<vmem>>, %arg6: memref<128x128xf32, #tpu.memory_space<vmem>>) attributes {dimension_semantics = [#tpu.dimension_semantics<parallel>, #tpu.dimension_semantics<parallel>, #tpu.dimension_semantics<arbitrary>], iteration_bounds = array<i64: 2, 2, 1>, scalar_prefetch = 0 : i64, scratch_operands = 1 : i64, tpu.core_type = #tpu.core_type<tc>, window_params = [{transform_indices = @transform_0, window_bounds = array<i64: 128, 128>}, {transform_indices = @transform_1, window_bounds = array<i64: 128, 128>}, {transform_indices = @transform_2, window_bounds = array<i64: 128, 128>}]} {
    %c0_i32 = arith.constant 0 : i32
    %0 = arith.cmpi eq, %arg2, %c0_i32 : i32
    %1 = arith.extui %0 : i1 to i32
    %c0_i32_0 = arith.constant 0 : i32
    %2 = arith.cmpi ne, %1, %c0_i32_0 : i32
    scf.if %2 {
      %cst_10 = arith.constant 0.000000e+00 : f32
      %12 = vector.broadcast %cst_10 : f32 to vector<128x128xf32>
      %c0_11 = arith.constant 0 : index
      %c0_12 = arith.constant 0 : index
      %13 = vector.load %arg6[%c0_11, %c0_12] : memref<128x128xf32, #tpu.memory_space<vmem>>, vector<128x128xf32>
      tpu.vector_store %arg6[%c0_11, %c0_12], %12 {strides = array<i32>} : memref<128x128xf32, #tpu.memory_space<vmem>>, vector<128x128xf32>,
    } else {
    }
    %c0 = arith.constant 0 : index
    %c0_1 = arith.constant 0 : index
    %3 = vector.load %arg6[%c0, %c0_1] : memref<128x128xf32, #tpu.memory_space<vmem>>, vector<128x128xf32>
    %c0_2 = arith.constant 0 : index
    %c0_3 = arith.constant 0 : index
    %4 = vector.load %arg3[%c0_2, %c0_3] : memref<128x128xbf16, #tpu.memory_space<vmem>>, vector<128x128xbf16>
    %c0_4 = arith.constant 0 : index
    %c0_5 = arith.constant 0 : index
    %5 = vector.load %arg4[%c0_4, %c0_5] : memref<128x128xbf16, #tpu.memory_space<vmem>>, vector<128x128xbf16>
    %cst = arith.constant dense<0.000000e+00> : vector<128x128xf32>
    %6 = tpu.matmul %4, %5, %cst {dimension_numbers = #tpu.dot_dimension_numbers<[1], [0], [0], [1], [0, 0, 1, 1], [], []>} : vector<128x128xbf16>, vector<128x128xbf16>, vector<128x128xf32> -> vector<128x128xf32>
    %7 = arith.addf %3, %6 : vector<128x128xf32>
    %c0_6 = arith.constant 0 : index
    %c0_7 = arith.constant 0 : index
    %8 = vector.load %arg6[%c0_6, %c0_7] : memref<128x128xf32, #tpu.memory_space<vmem>>, vector<128x128xf32>
    tpu.vector_store %arg6[%c0_6, %c0_7], %7 {strides = array<i32>} : memref<128x128xf32, #tpu.memory_space<vmem>>, vector<128x128xf32>,
    %c0_i32_8 = arith.constant 0 : i32
    %9 = arith.cmpi eq, %arg2, %c0_i32_8 : i32
    %10 = arith.extui %9 : i1 to i32
    %c0_i32_9 = arith.constant 0 : i32
    %11 = arith.cmpi ne, %10, %c0_i32_9 : i32
    scf.if %11 {
      %c0_10 = arith.constant 0 : index
      %c0_11 = arith.constant 0 : index
      %12 = vector.load %arg6[%c0_10, %c0_11] : memref<128x128xf32, #tpu.memory_space<vmem>>, vector<128x128xf32>
      %13 = arith.truncf %12 : vector<128x128xf32> to vector<128x128xbf16>
      %c0_12 = arith.constant 0 : index
      %c0_13 = arith.constant 0 : index
      %14 = vector.load %arg5[%c0_12, %c0_13] : memref<128x128xbf16, #tpu.memory_space<vmem>>, vector<128x128xbf16>
      tpu.vector_store %arg5[%c0_12, %c0_13], %13 {strides = array<i32>} : memref<128x128xbf16, #tpu.memory_space<vmem>>, vector<128x128xbf16>,
    } else {
    }
    return
  }
  func.func @transform_0(%arg0: i32, %arg1: i32, %arg2: i32) -> (i32, i32) {
    %c0_i32 = arith.constant 0 : i32
    return %arg0, %arg2 : i32, i32
  }
  func.func @transform_1(%arg0: i32, %arg1: i32, %arg2: i32) -> (i32, i32) {
    %c0_i32 = arith.constant 0 : i32
    return %arg2, %arg1 : i32, i32
  }
  func.func @transform_2(%arg0: i32, %arg1: i32, %arg2: i32) -> (i32, i32) {
    %c0_i32 = arith.constant 0 : i32
    return %arg0, %arg1 : i32, i32
  }
}

</mosaic_0001>

<llo_original>
// kernel: tpu_custom_call.1
$region0: #{tpu_custom_call.1}
  #allocation0 [shape = 'u32[]', space=smem, size = 0x4, offset = 0x4, fixed_abs, tag = 'smem constant byte address 0x4 - core index']
  #allocation1 [shape = 'u32[144,128]{1,0:T(1,128)}', space=vmem, size = 0x12000, scoped, tag = 'internal scratch']
  #allocation2 [shape = 'f32[128,128]{1,0:T(8,128)}', space=vmem, size = 0x10000, scoped, tag = 'scratch operand']
  %s0 = inlined_call_operand.hbm [shape: bf16[256,128], index: 0, kind: input, shape index: {}]
  %s1 = inlined_call_operand.hbm [shape: bf16[128,256], index: 1, kind: input, shape index: {}]
  %s2 = inlined_call_operand.hbm [shape: bf16[256,256], index: 2, kind: output, shape index: {}]
  %s3 = sld [smem:[#allocation0]]
  $region57: #{tpu_custom_call.1} parent=0
    _
  %s5 = ssub.s32 1, %s3
  %s6 = scalar_select 0, %s5, %s3
  $region1: #{tpu_custom_call.1} parent=0
    #allocation3 [shape = 'u8[65536]{0}', space=vmem, size = 0x10000, scoped, tag = 'input window, operand 0']
    #allocation4 [shape = 's32[2]{0}', space=sflag, size = 0x8, scoped, tag = 'scoped memory for tpu_custom_call.1']
    #allocation5 [shape = 's32[2]{0}', space=sflag, size = 0x8, scoped, tag = 'scoped memory for tpu_custom_call.1']
    #allocation6 [shape = 'u8[65536]{0}', space=vmem, size = 0x10000, scoped, tag = 'input window, operand 1']
    #allocation7 [shape = 's32[2]{0}', space=sflag, size = 0x8, scoped, tag = 'scoped memory for tpu_custom_call.1']
    #allocation8 [shape = 'u8[65536]{0}', space=vmem, size = 0x10000, scoped, tag = 'output window, operand 0']
    %7 = vsyncpa [#allocation4], 0
    %s8 = scalar_lea.sflag [#allocation4], 1
    %9 = vsyncpa %s8, 0
    %10 = vsyncpa [#allocation7], 0
    %s11 = scalar_lea.sflag [#allocation7], 1
    %12 = vsyncpa %s11, 0
    %13 = vsyncpa [#allocation5], 0
    %s14 = scalar_lea.sflag [#allocation5], 1
    %15 = vsyncpa %s14, 0
    loop: start=0, step=1, limit=6
    $region2: #{tpu_custom_call.1} parent=1 // loop_pre_header
      _
    $region3: #{tpu_custom_call.1} parent=1 // loop_header
      %s17 = sphi 0, %s21
      %p18 = scmp.ge.s32.totalorder %s17, 6
      %s24 = sphi 0, %s43
      %s25 = sphi 0, %s39
      %s26 = sphi 0, %s35
      %s27 = sphi 0, %s24
      %s28 = sphi 0, %s25
      %s29 = sphi 0, %s26
      %s30 = sphi 0, %s27
      %s31 = sphi 0, %s28
      %s32 = sphi 0, %s29
      %s48 = sphi 0, %s50
      %s51 = sphi 0, %s48
      %s52 = sphi 0, %s51
      %s68 = sphi 0, %s52
      %s76 = sphi 0, %s78
      %s79 = sphi 0, %s76
      %s80 = sphi 0, %s79
      %s96 = sphi 0, %s80
      %s104 = sphi 0, %s106
      %s107 = sphi 0, %s104
      %s108 = sphi 0, %s107
      %s124 = sphi 0, %s108
    $region4: #{tpu_custom_call.1} parent=1 // loop_header_branch
      %20 = sbr.rel (%p18) target = $region8
    $region5: #{tpu_custom_call.1} parent=1 // loop_body
      %s22 = ssub.s32 %s17, 1
      %s23 = ssub.s32 %s17, 2
      %s33 = sadd.s32 1, %s26
      %p34 = scmp.ge.s32.totalorder %s33, 1
      %s35 = scalar_select %p34, 0, %s33
      %s36 = sadd.s32 1, %s25
      %s37 = scalar_select %p34, %s36, %s25
      %p38 = scmp.ge.s32.totalorder %s37, 2
      %s39 = scalar_select %p38, 0, %s37
      %s40 = sadd.s32 1, %s24
      %s41 = scalar_select %p38, %s40, %s24
      %p42 = scmp.ge.s32.totalorder %s41, 2
      %s43 = scalar_select %p42, 0, %s41
      %s44 = ssub.s32 %s24, %s43
      %s45 = ssub.s32 %s26, %s35
      %s46 = sor.u32 %s44, %s45
      %p47 = scmp.eq.s32.totalorder %s46, 0
      %s49 = sadd.s32 %s48, 1
      %s50 = scalar_select %p47, %s48, %s49
      %p53 = pneg %p47
      %p54 = scmp.eq.s32.totalorder %s17, 3
      %p55 = por %p53, %p54
      %p56 = scmp.ne.s32.totalorder %s48, %s51
      %p57 = scmp.eq.s32.totalorder %s17, 0
      %p58 = por %p56, %p57
      %p59 = scmp.ne.s32.totalorder %s48, %s51
      %p60 = scmp.eq.s32.totalorder %s22, 3
      %p61 = por %p59, %p60
      %p62 = scmp.ne.s32.totalorder %s51, %s52
      %p63 = scmp.eq.s32.totalorder %s22, 0
      %p64 = por %p62, %p63
      %p65 = scmp.ne.s32.totalorder %s51, %s52
      %p66 = scmp.eq.s32.totalorder %s23, 3
      %p67 = por %p65, %p66
      %p69 = scmp.ne.s32.totalorder %s52, %s68
      %p70 = scmp.eq.s32.totalorder %s23, 0
      %p71 = por %p69, %p70
      %s72 = ssub.s32 %s26, %s35
      %s73 = ssub.s32 %s25, %s39
      %s74 = sor.u32 %s72, %s73
      %p75 = scmp.eq.s32.totalorder %s74, 0
      %s77 = sadd.s32 %s76, 1
      %s78 = scalar_select %p75, %s76, %s77
      %p81 = pneg %p75
      %p82 = scmp.eq.s32.totalorder %s17, 3
      %p83 = por %p81, %p82
      %p84 = scmp.ne.s32.totalorder %s76, %s79
      %p85 = scmp.eq.s32.totalorder %s17, 0
      %p86 = por %p84, %p85
      %p87 = scmp.ne.s32.totalorder %s76, %s79
      %p88 = scmp.eq.s32.totalorder %s22, 3
      %p89 = por %p87, %p88
      %p90 = scmp.ne.s32.totalorder %s79, %s80
      %p91 = scmp.eq.s32.totalorder %s22, 0
      %p92 = por %p90, %p91
      %p93 = scmp.ne.s32.totalorder %s79, %s80
      %p94 = scmp.eq.s32.totalorder %s23, 3
      %p95 = por %p93, %p94
      %p97 = scmp.ne.s32.totalorder %s80, %s96
      %p98 = scmp.eq.s32.totalorder %s23, 0
      %p99 = por %p97, %p98
      %s100 = ssub.s32 %s24, %s43
      %s101 = ssub.s32 %s25, %s39
      %s102 = sor.u32 %s100, %s101
      %p103 = scmp.eq.s32.totalorder %s102, 0
      %s105 = sadd.s32 %s104, 1
      %s106 = scalar_select %p103, %s104, %s105
      %p109 = pneg %p103
      %p110 = scmp.eq.s32.totalorder %s17, 3
      %p111 = por %p109, %p110
      %p112 = scmp.ne.s32.totalorder %s104, %s107
      %p113 = scmp.eq.s32.totalorder %s17, 0
      %p114 = por %p112, %p113
      %p115 = scmp.ne.s32.totalorder %s104, %s107
      %p116 = scmp.eq.s32.totalorder %s22, 3
      %p117 = por %p115, %p116
      %p118 = scmp.ne.s32.totalorder %s107, %s108
      %p119 = scmp.eq.s32.totalorder %s22, 0
      %p120 = por %p118, %p119
      %p121 = scmp.ne.s32.totalorder %s107, %s108
      %p122 = scmp.eq.s32.totalorder %s23, 3
      %p123 = por %p121, %p122
      %p125 = scmp.ne.s32.totalorder %s108, %s124
      %p126 = scmp.eq.s32.totalorder %s23, 0
      %p127 = por %p125, %p126
      %p128 = scmp.le.s32.totalorder 1, %s17
      %p129 = scmp.lt.s32.totalorder %s17, 5
      %p130 = pnand %p128, %p129
      %p131 = pneg %p130
      // Predicated region
      $region9: #{tpu_custom_call.1} parent=5 // pred_check
        _
      $region10: #{tpu_custom_call.1} parent=5 // pred_check_branch
        %133 = sbr.rel (%p130) target = $region12
      $region11: #{tpu_custom_call.1} parent=5 // pred_region
        %s134 = ssub.s32 %s17, 1
      $region12: #{tpu_custom_call.1} parent=5 // pred_fallthru
        _
      %p135 = scmp.lt.s32.totalorder %s17, 4
      // Predicated region
      $region13: #{tpu_custom_call.1} parent=5 // pred_check
        %p136 = pneg %p135
      $region14: #{tpu_custom_call.1} parent=5 // pred_check_branch
        %138 = sbr.rel (%p136) target = $region16
      $region15: #{tpu_custom_call.1} parent=5 // pred_region
        // Predicated region
        $region17: #{tpu_custom_call.1} parent=15 // pred_check
          %p139 = pneg %p58
        $region18: #{tpu_custom_call.1} parent=15 // pred_check_branch
          %141 = sbr.rel (%p139) target = $region20
        $region19: #{tpu_custom_call.1} parent=15 // pred_region
          %s142 = sand.u32 %s48, 1
          %s143 = scalar_lea.sflag [#allocation4], %s142
          %s144 = sand.u32 %s48, 1
          %s145 = smul.addr %s144, 64
          %s146 = scalar_lea.vmem [#allocation3], %s145
          %s147 = smul.u32 16, %s24
          %s149 = ssub.s32 1024, 1024
          %150 = vsyncadd %s143, %s149
          %s151 = sadd.s32 %s26, %s147
          %s152 = smul.addr %s151, 64
          %s153 = scalar_lea.hbm %s0, %s152
          %s154 = sshll.u32 %s146, 4
          %s155 = int_to_ptr.vmem [resolvable:$true] %s154
          %160 = dma.hbm_to_vmem [thread:$0]  %s153, 1024, %s155, %s143, 64, 64, 4
        $region20: #{tpu_custom_call.1} parent=15 // pred_fallthru
          _
        // Predicated region
        $region21: #{tpu_custom_call.1} parent=15 // pred_check
          %p161 = pneg %p86
        $region22: #{tpu_custom_call.1} parent=15 // pred_check_branch
          %163 = sbr.rel (%p161) target = $region24
        $region23: #{tpu_custom_call.1} parent=15 // pred_region
          %s164 = sand.u32 %s76, 1
          %s165 = scalar_lea.sflag [#allocation7], %s164
          %s166 = sand.u32 %s76, 1
          %s167 = smul.addr %s166, 64
          %s168 = scalar_lea.vmem [#allocation6], %s167
          %s169 = smul.u32 16, %s26
          %s171 = ssub.s32 1024, 1024
          %172 = vsyncadd %s165, %s171
          %s173 = smul.addr %s169, 2
          %s174 = sadd.s32 %s25, %s173
          %s175 = smul.addr %s174, 64
          %s176 = scalar_lea.hbm %s1, %s175
          %s177 = sshll.u32 %s168, 4
          %s178 = int_to_ptr.vmem [resolvable:$true] %s177
          %183 = dma.hbm_to_vmem [thread:$0]  %s176, 1024, %s178, %s165, 128, 64, 4
        $region24: #{tpu_custom_call.1} parent=15 // pred_fallthru
          _
      $region16: #{tpu_custom_call.1} parent=5 // pred_fallthru
        _
      %p184 = scmp.le.s32.totalorder 1, %s17
      %p185 = scmp.lt.s32.totalorder %s17, 5
      %p186 = pnand %p184, %p185
      %p187 = pneg %p186
      // Predicated region
      $region25: #{tpu_custom_call.1} parent=5 // pred_check
        _
      $region26: #{tpu_custom_call.1} parent=5 // pred_check_branch
        %189 = sbr.rel (%p186) target = $region28
      $region27: #{tpu_custom_call.1} parent=5 // pred_region
        %s190 = ssub.s32 %s17, 1
        %s191 = sand.u32 %s51, 1
        %s192 = scalar_lea.sflag [#allocation4], %s191
        %s193 = sand.u32 %s51, 1
        %s194 = smul.addr %s193, 64
        %s195 = scalar_lea.vmem [#allocation3], %s194
        // Predicated region
        $region29: #{tpu_custom_call.1} parent=27 // pred_check
          %p196 = pneg %p64
        $region30: #{tpu_custom_call.1} parent=27 // pred_check_branch
          %198 = sbr.rel (%p196) target = $region32
        $region31: #{tpu_custom_call.1} parent=27 // pred_region
          %199 = dma.done %s192, 1024
        $region32: #{tpu_custom_call.1} parent=27 // pred_fallthru
          _
        %s200 = sand.u32 %s79, 1
        %s201 = scalar_lea.sflag [#allocation7], %s200
        %s202 = sand.u32 %s79, 1
        %s203 = smul.addr %s202, 64
        %s204 = scalar_lea.vmem [#allocation6], %s203
        // Predicated region
        $region33: #{tpu_custom_call.1} parent=27 // pred_check
          %p205 = pneg %p92
        $region34: #{tpu_custom_call.1} parent=27 // pred_check_branch
          %207 = sbr.rel (%p205) target = $region36
        $region35: #{tpu_custom_call.1} parent=27 // pred_region
          %208 = dma.done %s201, 1024
        $region36: #{tpu_custom_call.1} parent=27 // pred_fallthru
          _
        %s209 = sand.u32 %s51, 1
        %s210 = scalar_lea.sflag [#allocation4], %s209
        %s211 = sand.u32 %s51, 1
        %s212 = smul.addr %s211, 64
        %s213 = scalar_lea.vmem [#allocation3], %s212
        %p214 = pneg %p64
        %p215 = pneg %p61
        %s216 = sand.u32 %s79, 1
        %s217 = scalar_lea.sflag [#allocation7], %s216
        %s218 = sand.u32 %s79, 1
        %s219 = smul.addr %s218, 64
        %s220 = scalar_lea.vmem [#allocation6], %s219
        %p221 = pneg %p92
        %p222 = pneg %p89
        %p223 = pneg %p120
        %p224 = pneg %p117
        %s225 = sand.u32 %s107, 1
        %s226 = scalar_lea.sflag [#allocation5], %s225
        %s227 = sand.u32 %s107, 1
        %s228 = smul.addr %s227, 64
        %s229 = scalar_lea.vmem [#allocation8], %s228
        %s230 = smul.u32 16, %s27
        %s231 = smul.u32 16, %s29
        %s232 = smul.u32 16, %s27
        %p234 = scmp.eq.s32.totalorder %s29, 0
        // Predicated region
        $region37: #{tpu_custom_call.1} parent=27 // pred_check
          %p235 = pneg %p234
        $region38: #{tpu_custom_call.1} parent=27 // pred_check_branch
          %237 = sbr.rel (%p235) target = $region40
        $region39: #{tpu_custom_call.1} parent=27 // pred_region
          %238 = vst [vmem:[#allocation2] sm:$0xff] 0.0
          %239 = vst [vmem:[#allocation2 + $0x8] sm:$0xff] 0.0
          %240 = vst [vmem:[#allocation2 + $0x10] sm:$0xff] 0.0
          %241 = vst [vmem:[#allocation2 + $0x18] sm:$0xff] 0.0
          %242 = vst [vmem:[#allocation2 + $0x20] sm:$0xff] 0.0
          %243 = vst [vmem:[#allocation2 + $0x28] sm:$0xff] 0.0
          %244 = vst [vmem:[#allocation2 + $0x30] sm:$0xff] 0.0
          %245 = vst [vmem:[#allocation2 + $0x38] sm:$0xff] 0.0
          %246 = vst [vmem:[#allocation2 + $0x40] sm:$0xff] 0.0
          %247 = vst [vmem:[#allocation2 + $0x48] sm:$0xff] 0.0
          %248 = vst [vmem:[#allocation2 + $0x50] sm:$0xff] 0.0
          %249 = vst [vmem:[#allocation2 + $0x58] sm:$0xff] 0.0
          %250 = vst [vmem:[#allocation2 + $0x60] sm:$0xff] 0.0
          %251 = vst [vmem:[#allocation2 + $0x68] sm:$0xff] 0.0
          %252 = vst [vmem:[#allocation2 + $0x70] sm:$0xff] 0.0
          %253 = vst [vmem:[#allocation2 + $0x78] sm:$0xff] 0.0
        $region40: #{tpu_custom_call.1} parent=27 // pred_fallthru
          _
        %v254 = vld [vmem:[#allocation2] sm:$0xff]
        %v255 = vld [vmem:[#allocation2 + $0x8] sm:$0xff]
        %v256 = vld [vmem:[#allocation2 + $0x10] sm:$0xff]
        %v257 = vld [vmem:[#allocation2 + $0x18] sm:$0xff]
        %v258 = vld [vmem:[#allocation2 + $0x20] sm:$0xff]
        %v259 = vld [vmem:[#allocation2 + $0x28] sm:$0xff]
        %v260 = vld [vmem:[#allocation2 + $0x30] sm:$0xff]
        %v261 = vld [vmem:[#allocation2 + $0x38] sm:$0xff]
        %v262 = vld [vmem:[#allocation2 + $0x40] sm:$0xff]
        %v263 = vld [vmem:[#allocation2 + $0x48] sm:$0xff]
        %v264 = vld [vmem:[#allocation2 + $0x50] sm:$0xff]
        %v265 = vld [vmem:[#allocation2 + $0x58] sm:$0xff]
        %v266 = vld [vmem:[#allocation2 + $0x60] sm:$0xff]
        %v267 = vld [vmem:[#allocation2 + $0x68] sm:$0xff]
        %v268 = vld [vmem:[#allocation2 + $0x70] sm:$0xff]
        %v269 = vld [vmem:[#allocation2 + $0x78] sm:$0xff]
        %v270 = vld [vmem:[%s195] sm:$0xf]
        %v271 = vld [vmem:[%s195 + $0x4] sm:$0xf]
        %v272 = vld [vmem:[%s195 + $0x8] sm:$0xf]
        %v273 = vld [vmem:[%s195 + $0xc] sm:$0xf]
        %v274 = vld [vmem:[%s195 + $0x10] sm:$0xf]
        %v275 = vld [vmem:[%s195 + $0x14] sm:$0xf]
        %v276 = vld [vmem:[%s195 + $0x18] sm:$0xf]
        %v277 = vld [vmem:[%s195 + $0x1c] sm:$0xf]
        %v278 = vld [vmem:[%s195 + $0x20] sm:$0xf]
        %v279 = vld [vmem:[%s195 + $0x24] sm:$0xf]
        %v280 = vld [vmem:[%s195 + $0x28] sm:$0xf]
        %v281 = vld [vmem:[%s195 + $0x2c] sm:$0xf]
        %v282 = vld [vmem:[%s195 + $0x30] sm:$0xf]
        %v283 = vld [vmem:[%s195 + $0x34] sm:$0xf]
        %v284 = vld [vmem:[%s195 + $0x38] sm:$0xf]
        %v285 = vld [vmem:[%s195 + $0x3c] sm:$0xf]
        %v286 = vld [vmem:[%s204] sm:$0xf]
        %v287 = vld [vmem:[%s204 + $0x4] sm:$0xf]
        %v288 = vld [vmem:[%s204 + $0x8] sm:$0xf]
        %v289 = vld [vmem:[%s204 + $0xc] sm:$0xf]
        %v290 = vld [vmem:[%s204 + $0x10] sm:$0xf]
        %v291 = vld [vmem:[%s204 + $0x14] sm:$0xf]
        %v292 = vld [vmem:[%s204 + $0x18] sm:$0xf]
        %v293 = vld [vmem:[%s204 + $0x1c] sm:$0xf]
        %v294 = vld [vmem:[%s204 + $0x20] sm:$0xf]
        %v295 = vld [vmem:[%s204 + $0x24] sm:$0xf]
        %v296 = vld [vmem:[%s204 + $0x28] sm:$0xf]
        %v297 = vld [vmem:[%s204 + $0x2c] sm:$0xf]
        %v298 = vld [vmem:[%s204 + $0x30] sm:$0xf]
        %v299 = vld [vmem:[%s204 + $0x34] sm:$0xf]
        %v300 = vld [vmem:[%s204 + $0x38] sm:$0xf]
        %v301 = vld [vmem:[%s204 + $0x3c] sm:$0xf]
        %v318 = vunpack.c.l.b16 %v270
        %v319 = vunpack.c.l.b16 %v271
        %v320 = vunpack.c.l.b16 %v272
        %v321 = vunpack.c.l.b16 %v273
        %v322 = vunpack.c.l.b16 %v274
        %v323 = vunpack.c.l.b16 %v275
        %v324 = vunpack.c.l.b16 %v276
        %v325 = vunpack.c.l.b16 %v277
        %v326 = vunpack.c.l.b16 %v278
        %v327 = vunpack.c.l.b16 %v279
        %v328 = vunpack.c.l.b16 %v280
        %v329 = vunpack.c.l.b16 %v281
        %v330 = vunpack.c.l.b16 %v282
        %v331 = vunpack.c.l.b16 %v283
        %v332 = vunpack.c.l.b16 %v284
        %v333 = vunpack.c.l.b16 %v285
        %v334 = vpack.c.b16 %v319, %v318
        %v335 = vpack.c.b16 %v321, %v320
        %v336 = vpack.c.b16 %v323, %v322
        %v337 = vpack.c.b16 %v325, %v324
        %v338 = vpack.c.b16 %v327, %v326
        %v339 = vpack.c.b16 %v329, %v328
        %v340 = vpack.c.b16 %v331, %v330
        %v341 = vpack.c.b16 %v333, %v332
        %v366 = vunpack.c.l.b16 %v286
        %v367 = vunpack.c.l.b16 %v287
        %v368 = vunpack.c.l.b16 %v288
        %v369 = vunpack.c.l.b16 %v289
        %v370 = vunpack.c.l.b16 %v290
        %v371 = vunpack.c.l.b16 %v291
        %v372 = vunpack.c.l.b16 %v292
        %v373 = vunpack.c.l.b16 %v293
        %v374 = vunpack.c.l.b16 %v294
        %v375 = vunpack.c.l.b16 %v295
        %v376 = vunpack.c.l.b16 %v296
        %v377 = vunpack.c.l.b16 %v297
        %v378 = vunpack.c.l.b16 %v298
        %v379 = vunpack.c.l.b16 %v299
        %v380 = vunpack.c.l.b16 %v300
        %v381 = vunpack.c.l.b16 %v301
        %v382 = vpack.c.b16 %v367, %v366
        %v383 = vpack.c.b16 %v369, %v368
        %v384 = vpack.c.b16 %v371, %v370
        %v385 = vpack.c.b16 %v373, %v372
        %v386 = vpack.c.b16 %v375, %v374
        %v387 = vpack.c.b16 %v377, %v376
        %v388 = vpack.c.b16 %v379, %v378
        %v389 = vpack.c.b16 %v381, %v380
        %398 = vmatprep.subr.bf16.mxu0 0
        %399 = vmatpush1.bf16.msra.mxu0 %v382
        %400 = vmatprep.subr.bf16.mxu0 0
        %401 = vmatpush1.bf16.msra.mxu0 %v383
        %402 = vmatprep.subr.bf16.mxu0 0
        %403 = vmatpush1.bf16.msra.mxu0 %v384
        %404 = vmatprep.subr.bf16.mxu0 0
        %405 = vmatpush1.bf16.msra.mxu0 %v385
        %406 = vmatprep.subr.bf16.mxu0 0
        %407 = vmatpush1.bf16.msra.mxu0 %v386
        %408 = vmatprep.subr.bf16.mxu0 0
        %409 = vmatpush1.bf16.msra.mxu0 %v387
        %410 = vmatprep.subr.bf16.mxu0 0
        %411 = vmatpush1.bf16.msra.mxu0 %v388
        %412 = vmatprep.subr.bf16.mxu0 0
        %413 = vmatpush1.bf16.msra.mxu0 %v389
        %414 = vmatprep.subr.bf16.mxu0 0
        %415 = vmatpush1.bf16.msra.mxu0 0
        %416 = vmatprep.subr.bf16.mxu0 0
        %417 = vmatpush1.bf16.msra.mxu0 0
        %418 = vmatprep.subr.bf16.mxu0 0
        %419 = vmatpush1.bf16.msra.mxu0 0
        %420 = vmatprep.subr.bf16.mxu0 0
        %421 = vmatpush1.bf16.msra.mxu0 0
        %422 = vmatprep.subr.bf16.mxu0 0
        %423 = vmatpush1.bf16.msra.mxu0 0
        %424 = vmatprep.subr.bf16.mxu0 0
        %425 = vmatpush1.bf16.msra.mxu0 0
        %426 = vmatprep.subr.bf16.mxu0 0
        %427 = vmatpush1.bf16.msra.mxu0 0
        %428 = vmatprep.subr.bf16.mxu0 0
        %429 = vmatpush1.bf16.msra.mxu0 0
        %430 = vmatprep.mubr.bf16.mxu0 0
        %431 = vmatmul.mubr.bf16.gmra.mrb[0].mxu0 %v334
        %v432 = vpop.f32.mrb[0].mxu0
        %v433 = vadd.f32 0.0, %v432
        %v434 = vpop.f32.mrb[0].mxu0
        %v435 = vpop.f32.mrb[0].mxu0
        %v436 = vadd.f32 0.0, %v435
        %v437 = vpop.f32.mrb[0].mxu0
        %438 = vmatprep.mubr.bf16.mxu0 0
        %439 = vmatmul.mubr.bf16.gmra.mrb[0].mxu0 %v335
        %v440 = vpop.f32.mrb[0].mxu0
        %v441 = vadd.f32 0.0, %v440
        %v442 = vpop.f32.mrb[0].mxu0
        %v443 = vpop.f32.mrb[0].mxu0
        %v444 = vadd.f32 0.0, %v443
        %v445 = vpop.f32.mrb[0].mxu0
        %446 = vmatprep.mubr.bf16.mxu0 0
        %447 = vmatmul.mubr.bf16.gmra.mrb[0].mxu0 %v336
        %v448 = vpop.f32.mrb[0].mxu0
        %v449 = vadd.f32 0.0, %v448
        %v450 = vpop.f32.mrb[0].mxu0
        %v451 = vpop.f32.mrb[0].mxu0
        %v452 = vadd.f32 0.0, %v451
        %v453 = vpop.f32.mrb[0].mxu0
        %454 = vmatprep.mubr.bf16.mxu0 0
        %455 = vmatmul.mubr.bf16.gmra.mrb[0].mxu0 %v337
        %v456 = vpop.f32.mrb[0].mxu0
        %v457 = vadd.f32 0.0, %v456
        %v458 = vpop.f32.mrb[0].mxu0
        %v459 = vpop.f32.mrb[0].mxu0
        %v460 = vadd.f32 0.0, %v459
        %v461 = vpop.f32.mrb[0].mxu0
        %462 = vmatprep.mubr.bf16.mxu0 0
        %463 = vmatmul.mubr.bf16.gmra.mrb[0].mxu0 %v338
        %v464 = vpop.f32.mrb[0].mxu0
        %v465 = vadd.f32 0.0, %v464
        %v466 = vpop.f32.mrb[0].mxu0
        %v467 = vpop.f32.mrb[0].mxu0
        %v468 = vadd.f32 0.0, %v467
        %v469 = vpop.f32.mrb[0].mxu0
        %470 = vmatprep.mubr.bf16.mxu0 0
        %471 = vmatmul.mubr.bf16.gmra.mrb[0].mxu0 %v339
        %v472 = vpop.f32.mrb[0].mxu0
        %v473 = vadd.f32 0.0, %v472
        %v474 = vpop.f32.mrb[0].mxu0
        %v475 = vpop.f32.mrb[0].mxu0
        %v476 = vadd.f32 0.0, %v475
        %v477 = vpop.f32.mrb[0].mxu0
        %478 = vmatprep.mubr.bf16.mxu0 0
        %479 = vmatmul.mubr.bf16.gmra.mrb[0].mxu0 %v340
        %v480 = vpop.f32.mrb[0].mxu0
        %v481 = vadd.f32 0.0, %v480
        %v482 = vpop.f32.mrb[0].mxu0
        %v483 = vpop.f32.mrb[0].mxu0
        %v484 = vadd.f32 0.0, %v483
        %v485 = vpop.f32.mrb[0].mxu0
        %486 = vmatprep.mubr.bf16.mxu0 0
        %487 = vmatmul.mubr.bf16.gmra.mrb[0].mxu0 %v341
        %v488 = vpop.f32.mrb[0].mxu0
        %v489 = vadd.f32 0.0, %v488
        %v490 = vpop.f32.mrb[0].mxu0
        %v491 = vpop.f32.mrb[0].mxu0
        %v492 = vadd.f32 0.0, %v491
        %v493 = vpop.f32.mrb[0].mxu0
        %494 = vdwg.mxu0
        %v495 = vadd.f32 %v254, %v433
        %v496 = vadd.f32 %v255, %v436
        %v497 = vadd.f32 %v256, %v441
        %v498 = vadd.f32 %v257, %v444
        %v499 = vadd.f32 %v258, %v449
        %v500 = vadd.f32 %v259, %v452
        %v501 = vadd.f32 %v260, %v457
        %v502 = vadd.f32 %v261, %v460
        %v503 = vadd.f32 %v262, %v465
        %v504 = vadd.f32 %v263, %v468
        %v505 = vadd.f32 %v264, %v473
        %v506 = vadd.f32 %v265, %v476
        %v507 = vadd.f32 %v266, %v481
        %v508 = vadd.f32 %v267, %v484
        %v509 = vadd.f32 %v268, %v489
        %v510 = vadd.f32 %v269, %v492
        %511 = vst [vmem:[#allocation2] sm:$0xff] %v495
        %512 = vst [vmem:[#allocation2 + $0x8] sm:$0xff] %v496
        %513 = vst [vmem:[#allocation2 + $0x10] sm:$0xff] %v497
        %514 = vst [vmem:[#allocation2 + $0x18] sm:$0xff] %v498
        %515 = vst [vmem:[#allocation2 + $0x20] sm:$0xff] %v499
        %516 = vst [vmem:[#allocation2 + $0x28] sm:$0xff] %v500
        %517 = vst [vmem:[#allocation2 + $0x30] sm:$0xff] %v501
        %518 = vst [vmem:[#allocation2 + $0x38] sm:$0xff] %v502
        %519 = vst [vmem:[#allocation2 + $0x40] sm:$0xff] %v503
        %520 = vst [vmem:[#allocation2 + $0x48] sm:$0xff] %v504
        %521 = vst [vmem:[#allocation2 + $0x50] sm:$0xff] %v505
        %522 = vst [vmem:[#allocation2 + $0x58] sm:$0xff] %v506
        %523 = vst [vmem:[#allocation2 + $0x60] sm:$0xff] %v507
        %524 = vst [vmem:[#allocation2 + $0x68] sm:$0xff] %v508
        %525 = vst [vmem:[#allocation2 + $0x70] sm:$0xff] %v509
        %526 = vst [vmem:[#allocation2 + $0x78] sm:$0xff] %v510
        // Predicated region
        $region41: #{tpu_custom_call.1} parent=27 // pred_check
          %p527 = pneg %p234
        $region42: #{tpu_custom_call.1} parent=27 // pred_check_branch
          %529 = sbr.rel (%p527) target = $region44
        $region43: #{tpu_custom_call.1} parent=27 // pred_region
          %v530 = vld [vmem:[#allocation2] sm:$0xff]
          %v531 = vld [vmem:[#allocation2 + $0x8] sm:$0xff]
          %v532 = vld [vmem:[#allocation2 + $0x10] sm:$0xff]
          %v533 = vld [vmem:[#allocation2 + $0x18] sm:$0xff]
          %v534 = vld [vmem:[#allocation2 + $0x20] sm:$0xff]
          %v535 = vld [vmem:[#allocation2 + $0x28] sm:$0xff]
          %v536 = vld [vmem:[#allocation2 + $0x30] sm:$0xff]
          %v537 = vld [vmem:[#allocation2 + $0x38] sm:$0xff]
          %v538 = vld [vmem:[#allocation2 + $0x40] sm:$0xff]
          %v539 = vld [vmem:[#allocation2 + $0x48] sm:$0xff]
          %v540 = vld [vmem:[#allocation2 + $0x50] sm:$0xff]
          %v541 = vld [vmem:[#allocation2 + $0x58] sm:$0xff]
          %v542 = vld [vmem:[#allocation2 + $0x60] sm:$0xff]
          %v543 = vld [vmem:[#allocation2 + $0x68] sm:$0xff]
          %v544 = vld [vmem:[#allocation2 + $0x70] sm:$0xff]
          %v545 = vld [vmem:[#allocation2 + $0x78] sm:$0xff]
          %v546 = vpack.c.bf16 %v531, %v530
          %v547 = vpack.c.bf16 %v533, %v532
          %v548 = vpack.c.bf16 %v535, %v534
          %v549 = vpack.c.bf16 %v537, %v536
          %v550 = vpack.c.bf16 %v539, %v538
          %v551 = vpack.c.bf16 %v541, %v540
          %v552 = vpack.c.bf16 %v543, %v542
          %v553 = vpack.c.bf16 %v545, %v544
          %v562 = vunpack.c.l.b16 %v546
          %v563 = vunpack.c.h.b16 %v546
          %v564 = vunpack.c.l.b16 %v547
          %v565 = vunpack.c.h.b16 %v547
          %v566 = vunpack.c.l.b16 %v548
          %v567 = vunpack.c.h.b16 %v548
          %v568 = vunpack.c.l.b16 %v549
          %v569 = vunpack.c.h.b16 %v549
          %v570 = vunpack.c.l.b16 %v550
          %v571 = vunpack.c.h.b16 %v550
          %v572 = vunpack.c.l.b16 %v551
          %v573 = vunpack.c.h.b16 %v551
          %v574 = vunpack.c.l.b16 %v552
          %v575 = vunpack.c.h.b16 %v552
          %v576 = vunpack.c.l.b16 %v553
          %v577 = vunpack.c.h.b16 %v553
          %v578 = vpack.c.b16 %v562, %v562
          %v579 = vpack.c.b16 %v563, %v563
          %v580 = vpack.c.b16 %v564, %v564
          %v581 = vpack.c.b16 %v565, %v565
          %v582 = vpack.c.b16 %v566, %v566
          %v583 = vpack.c.b16 %v567, %v567
          %v584 = vpack.c.b16 %v568, %v568
          %v585 = vpack.c.b16 %v569, %v569
          %v586 = vpack.c.b16 %v570, %v570
          %v587 = vpack.c.b16 %v571, %v571
          %v588 = vpack.c.b16 %v572, %v572
          %v589 = vpack.c.b16 %v573, %v573
          %v590 = vpack.c.b16 %v574, %v574
          %v591 = vpack.c.b16 %v575, %v575
          %v592 = vpack.c.b16 %v576, %v576
          %v593 = vpack.c.b16 %v577, %v577
          %610 = vst [vmem:[%s229] sm:$0xf] %v578
          %611 = vst [vmem:[%s229 + $0x4] sm:$0xf] %v579
          %612 = vst [vmem:[%s229 + $0x8] sm:$0xf] %v580
          %613 = vst [vmem:[%s229 + $0xc] sm:$0xf] %v581
          %614 = vst [vmem:[%s229 + $0x10] sm:$0xf] %v582
          %615 = vst [vmem:[%s229 + $0x14] sm:$0xf] %v583
          %616 = vst [vmem:[%s229 + $0x18] sm:$0xf] %v584
          %617 = vst [vmem:[%s229 + $0x1c] sm:$0xf] %v585
          %618 = vst [vmem:[%s229 + $0x20] sm:$0xf] %v586
          %619 = vst [vmem:[%s229 + $0x24] sm:$0xf] %v587
          %620 = vst [vmem:[%s229 + $0x28] sm:$0xf] %v588
          %621 = vst [vmem:[%s229 + $0x2c] sm:$0xf] %v589
          %622 = vst [vmem:[%s229 + $0x30] sm:$0xf] %v590
          %623 = vst [vmem:[%s229 + $0x34] sm:$0xf] %v591
          %624 = vst [vmem:[%s229 + $0x38] sm:$0xf] %v592
          %625 = vst [vmem:[%s229 + $0x3c] sm:$0xf] %v593
        $region44: #{tpu_custom_call.1} parent=27 // pred_fallthru
          _
        %s626 = sand.u32 %s107, 1
        %s627 = scalar_lea.sflag [#allocation5], %s626
        %s628 = sand.u32 %s107, 1
        %s629 = smul.addr %s628, 64
        %s630 = scalar_lea.vmem [#allocation8], %s629
        // Predicated region
        $region45: #{tpu_custom_call.1} parent=27 // pred_check
          %p631 = pneg %p117
        $region46: #{tpu_custom_call.1} parent=27 // pred_check_branch
          %633 = sbr.rel (%p631) target = $region48
        $region47: #{tpu_custom_call.1} parent=27 // pred_region
          %s634 = smul.u32 16, %s27
          %s636 = ssub.s32 1024, 1024
          %637 = vsyncadd %s627, %s636
          %s638 = smul.addr %s634, 2
          %s639 = sadd.s32 %s28, %s638
          %s640 = smul.addr %s639, 64
          %s641 = scalar_lea.hbm %s2, %s640
          %s642 = sshll.u32 %s630, 4
          %s643 = int_to_ptr.vmem [resolvable:$true] %s642
          %648 = dma.vmem_to_hbm [thread:$0]  %s643, 1024, %s641, %s627, 64, 128, 4
        $region48: #{tpu_custom_call.1} parent=27 // pred_fallthru
          _
      $region28: #{tpu_custom_call.1} parent=5 // pred_fallthru
        _
      %p649 = scmp.le.s32.totalorder 2, %s17
      // Predicated region
      $region49: #{tpu_custom_call.1} parent=5 // pred_check
        %p650 = pneg %p649
      $region50: #{tpu_custom_call.1} parent=5 // pred_check_branch
        %652 = sbr.rel (%p650) target = $region52
      $region51: #{tpu_custom_call.1} parent=5 // pred_region
        %s653 = ssub.s32 %s17, 2
        // Predicated region
        $region53: #{tpu_custom_call.1} parent=51 // pred_check
          %p654 = pneg %p123
        $region54: #{tpu_custom_call.1} parent=51 // pred_check_branch
          %656 = sbr.rel (%p654) target = $region56
        $region55: #{tpu_custom_call.1} parent=51 // pred_region
          %s657 = sand.u32 %s108, 1
          %s658 = scalar_lea.sflag [#allocation5], %s657
          %s659 = sand.u32 %s108, 1
          %s660 = smul.addr %s659, 64
          %s661 = scalar_lea.vmem [#allocation8], %s660
          %662 = dma.done %s658, 1024
        $region56: #{tpu_custom_call.1} parent=51 // pred_fallthru
          _
      $region52: #{tpu_custom_call.1} parent=5 // pred_fallthru
        _
    $region6: #{tpu_custom_call.1} parent=1 // loop_footer
      %s21 = sadd.s32 1, %s17
    $region7: #{tpu_custom_call.1} parent=1 // loop_footer_branch
      %16 = sbr.rel target = $region3
    $region8: #{tpu_custom_call.1} parent=1 // loop_exit
      _
    %663 = vsyncpa [#allocation4], 1
    %s664 = scalar_lea.sflag [#allocation4], 1
    %665 = vsyncpa %s664, 1
    %666 = vsyncpa [#allocation7], 1
    %s667 = scalar_lea.sflag [#allocation7], 1
    %668 = vsyncpa %s667, 1
    %669 = vsyncpa [#allocation5], 1
    %s670 = scalar_lea.sflag [#allocation5], 1
    %671 = vsyncpa %s670, 1

</llo_original>
